<compile_context>
chip_gen: v7x
topology: tpu7x:2x2x1
jax: 0.10.0
libtpu: 0.0.40
codegen_flags: <defaults>
</compile_context>

<pallas_src>
import jax
import jax.numpy as jnp
from jax.experimental import pallas as pl
from jax.experimental.pallas import tpu as pltpu

LANE = 128          # batch is padded up to a multiple of the lane width
MAX_TILE = 32768    # max batch lanes per grid step (~384 KiB f32 per step)


def _xornet_kernel(x_ref, params_ref, o_ref):
    # params layout: [W1_00, W1_01, W1_10, W1_11, b1_0, b1_1, W2_00, W2_01, b2_0]
    w00 = params_ref[0]
    w01 = params_ref[1]
    w10 = params_ref[2]
    w11 = params_ref[3]
    b10 = params_ref[4]
    b11 = params_ref[5]
    v0 = params_ref[6]
    v1 = params_ref[7]
    b2 = params_ref[8]

    x = x_ref[...]          # (2, T): features on sublanes, batch on lanes
    x0 = x[0:1, :]          # (1, T)
    x1 = x[1:2, :]          # (1, T)

    h0 = jnp.maximum(x0 * w00 + x1 * w01 + b10, 0.0)
    h1 = jnp.maximum(x0 * w10 + x1 * w11 + b11, 0.0)
    o_ref[...] = h0 * v0 + h1 * v1 + b2


def xornet_forward(x, w1, b1, w2, b2, *, max_tile=MAX_TILE):
    """x: (n, 2) f32; w1: (2,2), b1: (2,), w2: (1,2), b2: (1,) (PyTorch conv.).
    Returns (n, 1) f32, identical semantics to XORNet.forward."""
    n = x.shape[0]
    n_lane = max(LANE, ((n + LANE - 1) // LANE) * LANE)
    tile = min(max_tile, n_lane)                  # multiple of 128 by construction
    n_pad = ((n_lane + tile - 1) // tile) * tile  # multiple of tile
    grid = (n_pad // tile,)

    # batch -> lanes; zero-pad the batch tail (garbage rows are sliced off below)
    xp = jnp.pad(x.astype(jnp.float32).T, ((0, 0), (0, n_pad - n)))

    # pack the 9 scalar parameters (SMEM; no per-call padded weight arrays)
    params = jnp.concatenate([
        jnp.asarray(w1, jnp.float32).reshape(-1),
        jnp.asarray(b1, jnp.float32).reshape(-1),
        jnp.asarray(w2, jnp.float32).reshape(-1),
        jnp.asarray(b2, jnp.float32).reshape(-1),
    ])

    out = pl.pallas_call(
        _xornet_kernel,
        out_shape=jax.ShapeDtypeStruct((1, n_pad), jnp.float32),
        grid=grid,
        in_specs=[
            pl.BlockSpec((2, tile), lambda i: (0, i)),           # activations, tiled over batch lanes
            pl.BlockSpec(memory_space=pltpu.MemorySpace.SMEM),   # 9 scalar params, resident in SMEM
        ],
        out_specs=pl.BlockSpec((1, tile), lambda i: (0, i)),
        compiler_params=pltpu.CompilerParams(
            dimension_semantics=("parallel",)),
    )(xp, params)

    # lane-dense slice of real batch rows, reshaped to PyTorch's (n, 1)
    return out[0, :n].reshape(n, 1)


def _ref_forward(x, w1, b1, w2, b2):
    return jnp.maximum(x @ w1.T + b1, 0.0) @ w2.T + b2


if __name__ == "__main__":
    key = jax.random.PRNGKey(0)
    k_x, k_w1, k_b1, k_w2, k_b2, k_x2 = jax.random.split(key, 6)

    # deterministic parameters, PyTorch nn.Linear shape conventions
    w1 = jax.random.normal(k_w1, (2, 2), jnp.float32) * 0.5   # fc1.weight (out, in)
    b1 = jax.random.normal(k_b1, (2,), jnp.float32) * 0.5     # fc1.bias
    w2 = jax.random.normal(k_w2, (1, 2), jnp.float32) * 0.5   # fc2.weight (out, in)
    b2 = jax.random.normal(k_b2, (1,), jnp.float32) * 0.5     # fc2.bias

    # small batch (matches the module's (n, 2) input)
    n = 8
    x = jax.random.normal(k_x, (n, 2), jnp.float32)
    out = jax.block_until_ready(xornet_forward(x, w1, b1, w2, b2))
    assert out.shape == (n, 1)
    assert jnp.allclose(out, _ref_forward(x, w1, b1, w2, b2), atol=1e-5, rtol=1e-5)

    # a non-multiple-of-128 batch to exercise the padding/slice path
    n2 = 300
    x2 = jax.random.normal(k_x2, (n2, 2), jnp.float32)
    out2 = jax.block_until_ready(xornet_forward(x2, w1, b1, w2, b2))
    assert out2.shape == (n2, 1)
    assert jnp.allclose(out2, _ref_forward(x2, w1, b1, w2, b2), atol=1e-5, rtol=1e-5)

    print("KERNEL_OK")
</pallas_src>

<mosaic_0001>
module attributes {stable_mosaic.version = 11 : i64} {
  func.func @_xornet_kernel(%arg0: i32, %arg1: memref<2x128xf32, #tpu.memory_space<vmem>>, %arg2: memref<9xf32, #tpu.memory_space<smem>>, %arg3: memref<1x128xf32, #tpu.memory_space<vmem>>) attributes {dimension_semantics = [#tpu.dimension_semantics<parallel>], iteration_bounds = array<i64: 1>, scalar_prefetch = 0 : i64, scratch_operands = 0 : i64, tpu.core_type = #tpu.core_type<tc>, window_params = [{transform_indices = @transform_0, window_bounds = array<i64: 2, 128>}, {transform_indices = @transform_1, window_bounds = array<i64: 9>}, {transform_indices = @transform_2, window_bounds = array<i64: 1, 128>}]} {
    %c0 = arith.constant 0 : index
    %0 = memref.load %arg2[%c0] : memref<9xf32, #tpu.memory_space<smem>>
    %c1 = arith.constant 1 : index
    %1 = memref.load %arg2[%c1] : memref<9xf32, #tpu.memory_space<smem>>
    %c2 = arith.constant 2 : index
    %2 = memref.load %arg2[%c2] : memref<9xf32, #tpu.memory_space<smem>>
    %c3 = arith.constant 3 : index
    %3 = memref.load %arg2[%c3] : memref<9xf32, #tpu.memory_space<smem>>
    %c4 = arith.constant 4 : index
    %4 = memref.load %arg2[%c4] : memref<9xf32, #tpu.memory_space<smem>>
    %c5 = arith.constant 5 : index
    %5 = memref.load %arg2[%c5] : memref<9xf32, #tpu.memory_space<smem>>
    %c6 = arith.constant 6 : index
    %6 = memref.load %arg2[%c6] : memref<9xf32, #tpu.memory_space<smem>>
    %c7 = arith.constant 7 : index
    %7 = memref.load %arg2[%c7] : memref<9xf32, #tpu.memory_space<smem>>
    %c8 = arith.constant 8 : index
    %8 = memref.load %arg2[%c8] : memref<9xf32, #tpu.memory_space<smem>>
    %c0_0 = arith.constant 0 : index
    %c0_1 = arith.constant 0 : index
    %9 = vector.load %arg1[%c0_0, %c0_1] : memref<2x128xf32, #tpu.memory_space<vmem>>, vector<2x128xf32>
    %10 = vector.extract_strided_slice %9 {offsets = [0, 0], sizes = [1, 128], strides = [1, 1]} : vector<2x128xf32> to vector<1x128xf32>
    %11 = vector.extract_strided_slice %9 {offsets = [1, 0], sizes = [1, 128], strides = [1, 1]} : vector<2x128xf32> to vector<1x128xf32>
    %12 = vector.broadcast %0 : f32 to vector<1x128xf32>
    %13 = arith.mulf %10, %12 : vector<1x128xf32>
    %14 = vector.broadcast %1 : f32 to vector<1x128xf32>
    %15 = arith.mulf %11, %14 : vector<1x128xf32>
    %16 = arith.addf %13, %15 : vector<1x128xf32>
    %17 = vector.broadcast %4 : f32 to vector<1x128xf32>
    %18 = arith.addf %16, %17 : vector<1x128xf32>
    %cst = arith.constant 0.000000e+00 : f32
    %19 = vector.broadcast %cst : f32 to vector<1x128xf32>
    %20 = arith.maximumf %18, %19 : vector<1x128xf32>
    %21 = vector.broadcast %2 : f32 to vector<1x128xf32>
    %22 = arith.mulf %10, %21 : vector<1x128xf32>
    %23 = vector.broadcast %3 : f32 to vector<1x128xf32>
    %24 = arith.mulf %11, %23 : vector<1x128xf32>
    %25 = arith.addf %22, %24 : vector<1x128xf32>
    %26 = vector.broadcast %5 : f32 to vector<1x128xf32>
    %27 = arith.addf %25, %26 : vector<1x128xf32>
    %cst_2 = arith.constant 0.000000e+00 : f32
    %28 = vector.broadcast %cst_2 : f32 to vector<1x128xf32>
    %29 = arith.maximumf %27, %28 : vector<1x128xf32>
    %30 = vector.broadcast %6 : f32 to vector<1x128xf32>
    %31 = arith.mulf %20, %30 : vector<1x128xf32>
    %32 = vector.broadcast %7 : f32 to vector<1x128xf32>
    %33 = arith.mulf %29, %32 : vector<1x128xf32>
    %34 = arith.addf %31, %33 : vector<1x128xf32>
    %35 = vector.broadcast %8 : f32 to vector<1x128xf32>
    %36 = arith.addf %34, %35 : vector<1x128xf32>
    %c0_3 = arith.constant 0 : index
    %c0_4 = arith.constant 0 : index
    %37 = vector.load %arg3[%c0_3, %c0_4] : memref<1x128xf32, #tpu.memory_space<vmem>>, vector<1x128xf32>
    tpu.vector_store %arg3[%c0_3, %c0_4], %36 {strides = array<i32>} : memref<1x128xf32, #tpu.memory_space<vmem>>, vector<1x128xf32>,
    return
  }
  func.func @transform_0(%arg0: i32) -> (i32, i32) {
    %c0_i32 = arith.constant 0 : i32
    %c0_i32_0 = arith.constant 0 : i32
    return %c0_i32, %arg0 : i32, i32
  }
  func.func @transform_1(%arg0: i32) -> i32 {
    %c0_i32 = arith.constant 0 : i32
    %c0_i32_0 = arith.constant 0 : i32
    return %c0_i32 : i32
  }
  func.func @transform_2(%arg0: i32) -> (i32, i32) {
    %c0_i32 = arith.constant 0 : i32
    %c0_i32_0 = arith.constant 0 : i32
    return %c0_i32, %arg0 : i32, i32
  }
}

</mosaic_0001>

<llo_original>
// kernel: tpu_custom_call.1
$region0: #{tpu_custom_call.1}
  #allocation0 [shape = 'u32[]', space=smem, size = 0x4, offset = 0x4, fixed_abs, tag = 'smem constant byte address 0x4 - core index']
  #allocation1 [shape = 'u32[144,128]{1,0:T(1,128)}', space=vmem, size = 0x12000, scoped, tag = 'internal scratch']
  %s0 = inlined_call_operand.hbm [shape: f32[2,128], index: 0, kind: input, shape index: {}]
  %s1 = inlined_call_operand.vmem [shape: f32[9], index: 1, kind: input, shape index: {}]
  %s2 = inlined_call_operand.hbm [shape: f32[1,128], index: 2, kind: output, shape index: {}]
  %s3 = sld [smem:[#allocation0]]
  $region26: #{tpu_custom_call.1} parent=0
    _
  %s5 = ssub.s32 1, %s3
  %s6 = scalar_select 0, %s5, %s3
  $region1: #{tpu_custom_call.1} parent=0
    #allocation2 [shape = 'u8[1024]{0}', space=vmem, size = 0x400, scoped, tag = 'input window, operand 0, single buffered']
    #allocation3 [shape = 's32[1]{0}', space=sflag, size = 0x4, scoped, tag = 'scoped memory for tpu_custom_call.1']
    #allocation4 [shape = 's32[1]{0}', space=sflag, size = 0x4, scoped, tag = 'scoped memory for tpu_custom_call.1']
    #allocation5 [shape = 's32[1]{0}', space=sflag, size = 0x4, scoped, tag = 'scoped memory for tpu_custom_call.1']
    #allocation6 [shape = 'u8[512]{0}', space=smem, size = 0x200, scoped, tag = 'input window, operand 1, single buffered']
    #allocation7 [shape = 'u8[512]{0}', space=vmem, size = 0x400, scoped, tag = 'output window, operand 0, single buffered']
    %7 = vsyncpa [#allocation3], 0
    %8 = vsyncpa [#allocation5], 0
    %9 = vsyncpa [#allocation4], 0
    // Predicated region
    $region2: #{tpu_custom_call.1} parent=1 // pred_check
      _
    $region3: #{tpu_custom_call.1} parent=1 // pred_check_branch
      %11 = sbr.rel (0) target = $region5
    $region4: #{tpu_custom_call.1} parent=1 // pred_region
      %s13 = ssub.s32 32, 32
      %14 = vsyncadd [#allocation3], %s13
      %s16 = sshll.u32 [#allocation2], 4
      %s17 = int_to_ptr.vmem [resolvable:$true] %s16
      %19 = dma.hbm_to_vmem [thread:$0]  %s0, 32, %s17, [#allocation3]
    $region5: #{tpu_custom_call.1} parent=1 // pred_fallthru
      _
    // Predicated region
    $region6: #{tpu_custom_call.1} parent=1 // pred_check
      _
    $region7: #{tpu_custom_call.1} parent=1 // pred_check_branch
      %21 = sbr.rel (0) target = $region9
    $region8: #{tpu_custom_call.1} parent=1 // pred_region
      %s23 = ssub.s32 16, 16
      %24 = vsyncadd [#allocation5], %s23
      %s26 = sshll.u32 %s1, 4
      %s27 = int_to_ptr.vmem [resolvable:$true] %s26
      %29 = dma.vmem_to_smem %s27, 16, [#allocation6], [#allocation5]
    $region9: #{tpu_custom_call.1} parent=1 // pred_fallthru
      _
    // Predicated region
    $region10: #{tpu_custom_call.1} parent=1 // pred_check
      _
    $region11: #{tpu_custom_call.1} parent=1 // pred_check_branch
      %31 = sbr.rel (0) target = $region13
    $region12: #{tpu_custom_call.1} parent=1 // pred_region
      %32 = dma.done [#allocation3], 32
    $region13: #{tpu_custom_call.1} parent=1 // pred_fallthru
      _
    // Predicated region
    $region14: #{tpu_custom_call.1} parent=1 // pred_check
      _
    $region15: #{tpu_custom_call.1} parent=1 // pred_check_branch
      %34 = sbr.rel (0) target = $region17
    $region16: #{tpu_custom_call.1} parent=1 // pred_region
      %35 = dma.done [#allocation5], 16
    $region17: #{tpu_custom_call.1} parent=1 // pred_fallthru
      _
    %36 = sfence
    %s37 = sld [smem:[#allocation6]]
    %s38 = sld [smem:[#allocation6 + $0x1]]
    %s39 = sld [smem:[#allocation6 + $0x2]]
    %s40 = sld [smem:[#allocation6 + $0x3]]
    %s41 = sld [smem:[#allocation6 + $0x4]]
    %s42 = sld [smem:[#allocation6 + $0x5]]
    %s43 = sld [smem:[#allocation6 + $0x6]]
    %s44 = sld [smem:[#allocation6 + $0x7]]
    %s45 = sld [smem:[#allocation6 + $0x8]]
    %v46 = vld [vmem:[#allocation2] sm:$0x3]
    %v47 = vstv %s37
    %v48 = vmul.f32 %v46, %v47
    %v49 = vstv %s38
    %v50 = vmul.f32 %v46, %v49
    %v52 = vrot.slane %v50, 1
    %v54 = vadd.f32 %v48, %v52
    %v55 = vstv %s41
    %v56 = vadd.f32 %v54, %v55
    %v57 = vmax.f32 %v56, 0.0
    %v58 = vstv %s39
    %v59 = vmul.f32 %v46, %v58
    %v60 = vstv %s40
    %v61 = vmul.f32 %v46, %v60
    %v63 = vrot.slane %v61, 1
    %v65 = vadd.f32 %v59, %v63
    %v66 = vstv %s42
    %v67 = vadd.f32 %v65, %v66
    %v68 = vmax.f32 %v67, 0.0
    %v69 = vstv %s43
    %v70 = vmul.f32 %v57, %v69
    %v71 = vstv %s44
    %v72 = vmul.f32 %v68, %v71
    %v73 = vadd.f32 %v70, %v72
    %v74 = vstv %s45
    %v75 = vadd.f32 %v73, %v74
    %76 = vst [vmem:[#allocation7] sm:$0x1] %v75
    // Predicated region
    $region18: #{tpu_custom_call.1} parent=1 // pred_check
      _
    $region19: #{tpu_custom_call.1} parent=1 // pred_check_branch
      %78 = sbr.rel (0) target = $region21
    $region20: #{tpu_custom_call.1} parent=1 // pred_region
      %s80 = ssub.s32 16, 16
      %81 = vsyncadd [#allocation4], %s80
      %s83 = sshll.u32 [#allocation7], 4
      %s84 = int_to_ptr.vmem [resolvable:$true] %s83
      %86 = dma.vmem_to_hbm [thread:$0]  %s84, 16, %s2, [#allocation4]
    $region21: #{tpu_custom_call.1} parent=1 // pred_fallthru
      _
    // Predicated region
    $region22: #{tpu_custom_call.1} parent=1 // pred_check
      _
    $region23: #{tpu_custom_call.1} parent=1 // pred_check_branch
      %88 = sbr.rel (0) target = $region25
    $region24: #{tpu_custom_call.1} parent=1 // pred_region
      %89 = dma.done [#allocation4], 16
    $region25: #{tpu_custom_call.1} parent=1 // pred_fallthru
      _
    %90 = vsyncpa [#allocation3], 1
    %91 = vsyncpa [#allocation4], 1
    %92 = vsyncpa [#allocation5], 1

</llo_original>
